<compile_context>
chip_gen: v7x
topology: tpu7x:2x2x1
jax: 0.10.0
libtpu: 0.0.40
codegen_flags: <defaults>
</compile_context>

<pallas_src>
import functools

import jax
import jax.numpy as jnp
from jax import lax
from jax.experimental import pallas as pl
from jax.experimental.pallas import tpu as pltpu

_NUM_CORES = 2  # leading "parallel" grid axis (v7x: 2 TCs/chip)
# TODO(synk): gate _NUM_CORES on chip generation (pltpu.get_tpu_info) and/or switch
# the leading axis to pltpu.CORE_PARALLEL once dual-TC sharding of plain "parallel"
# axes has been verified with a v7x profile.


def _grad_l1_kernel(x_ref, wx_ref, wy_ref, out_ref, accx_ref, accy_ref, *,
                    W, HW, bp, P, steps, unroll):
    """x_ref: (bp, HW) planes.  wx/wy: (1, HW) weights (read only at finalize).
    out_ref: (1, 1) per-core scalar.  accx/accy: (8, HW) f32 scratch."""
    c = pl.program_id(0)
    i = pl.program_id(1)
    n_slabs = bp // 8

    @pl.when(i == 0)
    def _():
        accx_ref[...] = jnp.zeros_like(accx_ref)
        accy_ref[...] = jnp.zeros_like(accy_ref)

    # First logical plane of this block.  The index_map clamps the DMA in-bounds;
    # here we keep the *unclamped* base so duplicated tail blocks mask to zero.
    base = (c * steps + i) * bp

    def slab_diffs(s):
        off = pl.multiple_of(s * 8, 8)
        xs = x_ref[pl.ds(off, 8), :]                 # (8, HW) sublane slab
        right = pltpu.roll(xs, HW - 1, axis=1)       # x[k + 1]  (wraps -> weighted out)
        below = pltpu.roll(xs, HW - W, axis=1)       # x[k + W]  (wraps -> weighted out)
        # Keep diffs in the input dtype (bf16 stays packed); cast only for accumulation.
        dx = jnp.abs(xs - right).astype(jnp.float32)
        dy = jnp.abs(xs - below).astype(jnp.float32)
        return dx, dy

    zeros = jnp.zeros((8, HW), jnp.float32)

    @pl.when(base + bp <= P)                          # fully in-bounds block (common case)
    def _():
        def body(s, carry):
            sx, sy = carry
            dx, dy = slab_diffs(s)
            return sx + dx, sy + dy

        sx, sy = lax.fori_loop(0, n_slabs, body, (zeros, zeros), unroll=unroll)
        accx_ref[...] += sx
        accy_ref[...] += sy

    @pl.when(base + bp > P)                           # ragged / duplicated tail block
    def _():
        rows = lax.broadcasted_iota(jnp.int32, (8, HW), 0)

        def body(s, carry):
            sx, sy = carry
            dx, dy = slab_diffs(s)
            valid = (base + s * 8 + rows) < P         # mask planes past the real extent
            return (sx + jnp.where(valid, dx, 0.0),
                    sy + jnp.where(valid, dy, 0.0))

        sx, sy = lax.fori_loop(0, n_slabs, body, (zeros, zeros), unroll=unroll)
        accx_ref[...] += sx
        accy_ref[...] += sy

    @pl.when(i == steps - 1)                          # finalize: weight + reduce once/core
    def _():
        tot = accx_ref[...] * wx_ref[...] + accy_ref[...] * wy_ref[...]   # (8, HW)
        tot = jnp.sum(tot, axis=0, keepdims=True)                         # (1, HW)
        out_ref[...] = jnp.sum(tot, axis=1, keepdims=True)                # (1, 1)


def _round_up(x, m):
    return (x + m - 1) // m * m


def gradient_l1(a, *, target_tile_bytes=4 * 1024 * 1024):
    """Pallas implementation of Gradient_L1.forward for an NCHW array."""
    N, C, H, W = a.shape
    P = N * C
    HW = H * W

    # Flatten each plane into a lane-dense row; neighbour accesses stay inside the
    # last axis of each row (no cross-plane mixing).  This reshape is free in XLA.
    x = a.reshape(P, HW)

    # Planes fused per grid step (~target_tile_bytes per input block, sublane
    # aligned).  Double-buffered input + 2x (8, HW) scratch stays well under the
    # 32 MiB scoped-VMEM default on v5e/v6e/v7x for typical image sizes.
    itemsize = x.dtype.itemsize
    planes_per_tile = max(1, target_tile_bytes // (HW * itemsize))
    bp = max(8, (planes_per_tile // 8) * 8)
    bp = min(bp, _round_up(P, 8))
    # TODO(synk): very large planes (H*W*itemsize >> target_tile_bytes) would need
    # row-blocking with a one-row overlap to bound VMEM; not needed at these sizes.

    nb = pl.cdiv(P, bp)                 # number of real plane-blocks
    steps = pl.cdiv(nb, _NUM_CORES)     # grid steps per core
    n_slabs = bp // 8
    unroll = True if n_slabs <= 16 else 8

    # Mean divisors folded into per-column weights (guard empty-gradient case;
    # PyTorch would return NaN for a mean over zero elements when H==1 or W==1).
    n_x = P * H * (W - 1)
    n_y = P * (H - 1) * W
    inv_nx = 1.0 / n_x if n_x > 0 else 0.0
    inv_ny = 1.0 / n_y if n_y > 0 else 0.0
    col = jnp.arange(HW, dtype=jnp.int32)
    wx = jnp.where(col % W != W - 1, inv_nx, 0.0).astype(jnp.float32).reshape(1, HW)
    wy = jnp.where(col < (H - 1) * W, inv_ny, 0.0).astype(jnp.float32).reshape(1, HW)

    kernel = functools.partial(_grad_l1_kernel, W=W, HW=HW, bp=bp, P=P,
                               steps=steps, unroll=unroll)

    def x_index_map(c, i):
        # Clamp so no DMA ever starts fully out of bounds; duplicated tail blocks
        # are masked to zero inside the kernel (base index stays unclamped there).
        return (jnp.minimum(c * steps + i, nb - 1), 0)

    partials = pl.pallas_call(
        kernel,
        out_shape=jax.ShapeDtypeStruct((_NUM_CORES, 1, 1), jnp.float32),
        grid_spec=pltpu.PrefetchScalarGridSpec(
            num_scalar_prefetch=0,
            grid=(_NUM_CORES, steps),
            in_specs=[
                pl.BlockSpec((bp, HW), x_index_map),
                pl.BlockSpec((1, HW), lambda c, i: (0, 0)),
                pl.BlockSpec((1, HW), lambda c, i: (0, 0)),
            ],
            out_specs=pl.BlockSpec((None, 1, 1), lambda c, i: (c, 0, 0)),
            scratch_shapes=[
                pltpu.VMEM((8, HW), jnp.float32),   # sum |dx| accumulator
                pltpu.VMEM((8, HW), jnp.float32),   # sum |dy| accumulator
            ],
        ),
        compiler_params=pltpu.CompilerParams(
            dimension_semantics=("parallel", "arbitrary"),
            vmem_limit_bytes=32 * 1024 * 1024,
        ),
    )(x, wx, wy)

    # Tiny final reduction of the per-core scalars (8 bytes/core).
    return jnp.sum(partials)


def _reference(a):
    gx = jnp.abs(a[:, :, :, :-1] - a[:, :, :, 1:])
    gy = jnp.abs(a[:, :, :-1, :] - a[:, :, 1:, :])
    return jnp.mean(gx) + jnp.mean(gy)


if __name__ == "__main__":
    key = jax.random.PRNGKey(0)

    # Even case: P = 8 planes (plane-block divides exactly).
    x = jax.random.normal(key, (2, 4, 16, 16), dtype=jnp.float32)  # NCHW
    out = jax.block_until_ready(gradient_l1(x))
    ref = jax.block_until_ready(_reference(x))
    assert jnp.allclose(out, ref, rtol=1e-5, atol=1e-5), (out, ref)

    # Ragged case: P = 9 planes, non-square spatial -> exercises the in-kernel
    # tail mask and the clamped duplicated-block path (no jnp.pad anywhere).
    y = jax.random.normal(jax.random.PRNGKey(0), (3, 3, 8, 16), dtype=jnp.float32)
    out2 = jax.block_until_ready(gradient_l1(y))
    ref2 = jax.block_until_ready(_reference(y))
    assert jnp.allclose(out2, ref2, rtol=1e-5, atol=1e-5), (out2, ref2)

    print("KERNEL_OK")
</pallas_src>

<mosaic_0001>
module attributes {stable_mosaic.version = 11 : i64} {
  func.func @_grad_l1_kernel(%arg0: i32, %arg1: i32, %arg2: memref<8x256xf32, #tpu.memory_space<vmem>>, %arg3: memref<1x256xf32, #tpu.memory_space<vmem>>, %arg4: memref<1x256xf32, #tpu.memory_space<vmem>>, %arg5: memref<1x1x1xf32, #tpu.memory_space<vmem>>, %arg6: memref<8x256xf32, #tpu.memory_space<vmem>>, %arg7: memref<8x256xf32, #tpu.memory_space<vmem>>) attributes {dimension_semantics = [#tpu.dimension_semantics<parallel>, #tpu.dimension_semantics<arbitrary>], iteration_bounds = array<i64: 2, 1>, scalar_prefetch = 0 : i64, scratch_operands = 2 : i64, tpu.core_type = #tpu.core_type<tc>, window_params = [{transform_indices = @transform_0, window_bounds = array<i64: 8, 256>}, {pipeline_mode = #tpu.pipeline_mode<synchronous>, transform_indices = @transform_1, window_bounds = array<i64: 1, 256>}, {pipeline_mode = #tpu.pipeline_mode<synchronous>, transform_indices = @transform_2, window_bounds = array<i64: 1, 256>}, {transform_indices = @transform_3, window_bounds = array<i64: 1, 1, 1>}]} {
    %c0_i32 = arith.constant 0 : i32
    %0 = arith.cmpi eq, %arg1, %c0_i32 : i32
    %1 = arith.extui %0 : i1 to i32
    %c0_i32_0 = arith.constant 0 : i32
    %2 = arith.cmpi ne, %1, %c0_i32_0 : i32
    scf.if %2 {
      %cst_9 = arith.constant 0.000000e+00 : f32
      %18 = vector.broadcast %cst_9 : f32 to vector<8x256xf32>
      %c0 = arith.constant 0 : index
      %c0_10 = arith.constant 0 : index
      %19 = vector.load %arg6[%c0, %c0_10] : memref<8x256xf32, #tpu.memory_space<vmem>>, vector<8x256xf32>
      tpu.vector_store %arg6[%c0, %c0_10], %18 {strides = array<i32>} : memref<8x256xf32, #tpu.memory_space<vmem>>, vector<8x256xf32>,
      %cst_11 = arith.constant 0.000000e+00 : f32
      %20 = vector.broadcast %cst_11 : f32 to vector<8x256xf32>
      %c0_12 = arith.constant 0 : index
      %c0_13 = arith.constant 0 : index
      %21 = vector.load %arg7[%c0_12, %c0_13] : memref<8x256xf32, #tpu.memory_space<vmem>>, vector<8x256xf32>
      tpu.vector_store %arg7[%c0_12, %c0_13], %20 {strides = array<i32>} : memref<8x256xf32, #tpu.memory_space<vmem>>, vector<8x256xf32>,
    } else {
    }
    %c1_i32 = arith.constant 1 : i32
    %3 = arith.muli %arg0, %c1_i32 : i32
    %4 = arith.addi %3, %arg1 : i32
    %c8_i32 = arith.constant 8 : i32
    %5 = arith.muli %4, %c8_i32 : i32
    %cst = arith.constant 0.000000e+00 : f32
    %6 = vector.broadcast %cst : f32 to vector<8x256xf32>
    %c8_i32_1 = arith.constant 8 : i32
    %7 = arith.addi %5, %c8_i32_1 : i32
    %c8_i32_2 = arith.constant 8 : i32
    %8 = arith.cmpi sle, %7, %c8_i32_2 : i32
    %9 = arith.extui %8 : i1 to i32
    %c0_i32_3 = arith.constant 0 : i32
    %10 = arith.cmpi ne, %9, %c0_i32_3 : i32
    scf.if %10 {
      %c0_i32_9 = arith.constant 0 : i32
      %c8_i32_10 = arith.constant 8 : i32
      %18 = arith.muli %c0_i32_9, %c8_i32_10 : i32
      %19 = tpu.assume_multiple %18, 8 : i32
      %20 = arith.index_cast %19 : i32 to index
      %c0 = arith.constant 0 : index
      %21 = vector.load %arg2[%20, %c0] : memref<8x256xf32, #tpu.memory_space<vmem>>, vector<8x256xf32>
      %c255_i32 = arith.constant 255 : i32
      %22 = tpu.dynamic_rotate %21 by %c255_i32 dim 1 : vector<8x256xf32>, i32 -> vector<8x256xf32>
      %c240_i32 = arith.constant 240 : i32
      %23 = tpu.dynamic_rotate %21 by %c240_i32 dim 1 : vector<8x256xf32>, i32 -> vector<8x256xf32>
      %24 = arith.subf %21, %22 : vector<8x256xf32>
      %25 = math.absf %24 : vector<8x256xf32>
      %26 = arith.subf %21, %23 : vector<8x256xf32>
      %27 = math.absf %26 : vector<8x256xf32>
      %28 = arith.addf %6, %25 : vector<8x256xf32>
      %29 = arith.addf %6, %27 : vector<8x256xf32>
      %c1_i32_11 = arith.constant 1 : i32
      %c0_12 = arith.constant 0 : index
      %c0_13 = arith.constant 0 : index
      %30 = vector.load %arg6[%c0_12, %c0_13] : memref<8x256xf32, #tpu.memory_space<vmem>>, vector<8x256xf32>
      %31 = arith.addf %30, %28 : vector<8x256xf32>
      %c0_14 = arith.constant 0 : index
      %c0_15 = arith.constant 0 : index
      %32 = vector.load %arg6[%c0_14, %c0_15] : memref<8x256xf32, #tpu.memory_space<vmem>>, vector<8x256xf32>
      tpu.vector_store %arg6[%c0_14, %c0_15], %31 {strides = array<i32>} : memref<8x256xf32, #tpu.memory_space<vmem>>, vector<8x256xf32>,
      %c0_16 = arith.constant 0 : index
      %c0_17 = arith.constant 0 : index
      %33 = vector.load %arg7[%c0_16, %c0_17] : memref<8x256xf32, #tpu.memory_space<vmem>>, vector<8x256xf32>
      %34 = arith.addf %33, %29 : vector<8x256xf32>
      %c0_18 = arith.constant 0 : index
      %c0_19 = arith.constant 0 : index
      %35 = vector.load %arg7[%c0_18, %c0_19] : memref<8x256xf32, #tpu.memory_space<vmem>>, vector<8x256xf32>
      tpu.vector_store %arg7[%c0_18, %c0_19], %34 {strides = array<i32>} : memref<8x256xf32, #tpu.memory_space<vmem>>, vector<8x256xf32>,
    } else {
    }
    %c8_i32_4 = arith.constant 8 : i32
    %11 = arith.addi %5, %c8_i32_4 : i32
    %c8_i32_5 = arith.constant 8 : i32
    %12 = arith.cmpi sgt, %11, %c8_i32_5 : i32
    %13 = arith.extui %12 : i1 to i32
    %c0_i32_6 = arith.constant 0 : i32
    %14 = arith.cmpi ne, %13, %c0_i32_6 : i32
    scf.if %14 {
      %18 = tpu.iota {dimensions = array<i32: 0>} : vector<8x256xi32>
      %c0_i32_9 = arith.constant 0 : i32
      %c8_i32_10 = arith.constant 8 : i32
      %19 = arith.muli %c0_i32_9, %c8_i32_10 : i32
      %20 = tpu.assume_multiple %19, 8 : i32
      %21 = arith.index_cast %20 : i32 to index
      %c0 = arith.constant 0 : index
      %22 = vector.load %arg2[%21, %c0] : memref<8x256xf32, #tpu.memory_space<vmem>>, vector<8x256xf32>
      %c255_i32 = arith.constant 255 : i32
      %23 = tpu.dynamic_rotate %22 by %c255_i32 dim 1 : vector<8x256xf32>, i32 -> vector<8x256xf32>
      %c240_i32 = arith.constant 240 : i32
      %24 = tpu.dynamic_rotate %22 by %c240_i32 dim 1 : vector<8x256xf32>, i32 -> vector<8x256xf32>
      %25 = arith.subf %22, %23 : vector<8x256xf32>
      %26 = math.absf %25 : vector<8x256xf32>
      %27 = arith.subf %22, %24 : vector<8x256xf32>
      %28 = math.absf %27 : vector<8x256xf32>
      %c8_i32_11 = arith.constant 8 : i32
      %29 = arith.muli %c0_i32_9, %c8_i32_11 : i32
      %30 = arith.addi %5, %29 : i32
      %31 = vector.broadcast %30 : i32 to vector<8x256xi32>
      %32 = arith.addi %31, %18 : vector<8x256xi32>
      %c8_i32_12 = arith.constant 8 : i32
      %33 = vector.broadcast %c8_i32_12 : i32 to vector<8x256xi32>
      %34 = arith.cmpi slt, %32, %33 : vector<8x256xi32>
      %cst_13 = arith.constant 0.000000e+00 : f32
      %35 = vector.broadcast %cst_13 : f32 to vector<8x256xf32>
      %36 = arith.select %34, %26, %35 : vector<8x256xi1>, vector<8x256xf32>
      %37 = arith.addf %6, %36 : vector<8x256xf32>
      %cst_14 = arith.constant 0.000000e+00 : f32
      %38 = vector.broadcast %cst_14 : f32 to vector<8x256xf32>
      %39 = arith.select %34, %28, %38 : vector<8x256xi1>, vector<8x256xf32>
      %40 = arith.addf %6, %39 : vector<8x256xf32>
      %c1_i32_15 = arith.constant 1 : i32
      %c0_16 = arith.constant 0 : index
      %c0_17 = arith.constant 0 : index
      %41 = vector.load %arg6[%c0_16, %c0_17] : memref<8x256xf32, #tpu.memory_space<vmem>>, vector<8x256xf32>
      %42 = arith.addf %41, %37 : vector<8x256xf32>
      %c0_18 = arith.constant 0 : index
      %c0_19 = arith.constant 0 : index
      %43 = vector.load %arg6[%c0_18, %c0_19] : memref<8x256xf32, #tpu.memory_space<vmem>>, vector<8x256xf32>
      tpu.vector_store %arg6[%c0_18, %c0_19], %42 {strides = array<i32>} : memref<8x256xf32, #tpu.memory_space<vmem>>, vector<8x256xf32>,
      %c0_20 = arith.constant 0 : index
      %c0_21 = arith.constant 0 : index
      %44 = vector.load %arg7[%c0_20, %c0_21] : memref<8x256xf32, #tpu.memory_space<vmem>>, vector<8x256xf32>
      %45 = arith.addf %44, %40 : vector<8x256xf32>
      %c0_22 = arith.constant 0 : index
      %c0_23 = arith.constant 0 : index
      %46 = vector.load %arg7[%c0_22, %c0_23] : memref<8x256xf32, #tpu.memory_space<vmem>>, vector<8x256xf32>
      tpu.vector_store %arg7[%c0_22, %c0_23], %45 {strides = array<i32>} : memref<8x256xf32, #tpu.memory_space<vmem>>, vector<8x256xf32>,
    } else {
    }
    %c0_i32_7 = arith.constant 0 : i32
    %15 = arith.cmpi eq, %arg1, %c0_i32_7 : i32
    %16 = arith.extui %15 : i1 to i32
    %c0_i32_8 = arith.constant 0 : i32
    %17 = arith.cmpi ne, %16, %c0_i32_8 : i32
    scf.if %17 {
      %c0 = arith.constant 0 : index
      %c0_9 = arith.constant 0 : index
      %18 = vector.load %arg6[%c0, %c0_9] : memref<8x256xf32, #tpu.memory_space<vmem>>, vector<8x256xf32>
      %c0_10 = arith.constant 0 : index
      %c0_11 = arith.constant 0 : index
      %19 = vector.load %arg3[%c0_10, %c0_11] : memref<1x256xf32, #tpu.memory_space<vmem>>, vector<1x256xf32>
      %20 = vector.broadcast %19 : vector<1x256xf32> to vector<8x256xf32>
      %21 = arith.mulf %18, %20 : vector<8x256xf32>
      %c0_12 = arith.constant 0 : index
      %c0_13 = arith.constant 0 : index
      %22 = vector.load %arg7[%c0_12, %c0_13] : memref<8x256xf32, #tpu.memory_space<vmem>>, vector<8x256xf32>
      %c0_14 = arith.constant 0 : index
      %c0_15 = arith.constant 0 : index
      %23 = vector.load %arg4[%c0_14, %c0_15] : memref<1x256xf32, #tpu.memory_space<vmem>>, vector<1x256xf32>
      %24 = vector.broadcast %23 : vector<1x256xf32> to vector<8x256xf32>
      %25 = arith.mulf %22, %24 : vector<8x256xf32>
      %26 = arith.addf %21, %25 : vector<8x256xf32>
      %cst_16 = arith.constant dense<0.000000e+00> : vector<256xf32>
      %27 = vector.multi_reduction <add>, %26, %cst_16 [0] : vector<8x256xf32> to vector<256xf32>
      %28 = vector.shape_cast %27 : vector<256xf32> to vector<1x256xf32>
      %cst_17 = arith.constant dense<0.000000e+00> : vector<1xf32>
      %29 = vector.multi_reduction <add>, %28, %cst_17 [1] : vector<1x256xf32> to vector<1xf32>
      %30 = vector.shape_cast %29 : vector<1xf32> to vector<1x1xf32>
      %c0_18 = arith.constant 0 : index
      %c0_19 = arith.constant 0 : index
      %c0_20 = arith.constant 0 : index
      %31 = vector.load %arg5[%c0_18, %c0_19, %c0_20] : memref<1x1x1xf32, #tpu.memory_space<vmem>>, vector<1x1x1xf32>
      %32 = vector.shape_cast %31 : vector<1x1x1xf32> to vector<1x1xf32>
      %33 = vector.shape_cast %30 : vector<1x1xf32> to vector<1x1x1xf32>
      tpu.vector_store %arg5[%c0_18, %c0_19, %c0_20], %33 {strides = array<i32>} : memref<1x1x1xf32, #tpu.memory_space<vmem>>, vector<1x1x1xf32>,
    } else {
    }
    return
  }
  func.func @transform_0(%arg0: i32, %arg1: i32) -> (i32, i32) {
    %c1_i32 = arith.constant 1 : i32
    %0 = arith.muli %arg0, %c1_i32 : i32
    %1 = arith.addi %0, %arg1 : i32
    %c0_i32 = arith.constant 0 : i32
    %2 = arith.minsi %1, %c0_i32 : i32
    %c0_i32_0 = arith.constant 0 : i32
    %c0_i32_1 = arith.constant 0 : i32
    return %2, %c0_i32_0 : i32, i32
  }
  func.func @transform_1(%arg0: i32, %arg1: i32) -> (i32, i32) {
    %c0_i32 = arith.constant 0 : i32
    %c0_i32_0 = arith.constant 0 : i32
    %c0_i32_1 = arith.constant 0 : i32
    return %c0_i32, %c0_i32_0 : i32, i32
  }
  func.func @transform_2(%arg0: i32, %arg1: i32) -> (i32, i32) {
    %c0_i32 = arith.constant 0 : i32
    %c0_i32_0 = arith.constant 0 : i32
    %c0_i32_1 = arith.constant 0 : i32
    return %c0_i32, %c0_i32_0 : i32, i32
  }
  func.func @transform_3(%arg0: i32, %arg1: i32) -> (i32, i32, i32) {
    %c0_i32 = arith.constant 0 : i32
    %c0_i32_0 = arith.constant 0 : i32
    %c0_i32_1 = arith.constant 0 : i32
    return %arg0, %c0_i32, %c0_i32_0 : i32, i32, i32
  }
}

</mosaic_0001>

<llo_original>
// kernel: tpu_custom_call.1
$region0: #{tpu_custom_call.1}
  #allocation0 [shape = 'u32[]', space=smem, size = 0x4, offset = 0x4, fixed_abs, tag = 'smem constant byte address 0x4 - core index']
  #allocation1 [shape = 'u32[144,128]{1,0:T(1,128)}', space=vmem, size = 0x12000, scoped, tag = 'internal scratch']
  #allocation2 [shape = 'f32[8,256]{1,0:T(8,128)}', space=vmem, size = 0x2000, scoped, tag = 'scratch operand']
  #allocation3 [shape = 'f32[8,256]{1,0:T(8,128)}', space=vmem, size = 0x2000, scoped, tag = 'scratch operand']
  %s0 = inlined_call_operand.hbm [shape: f32[8,256], index: 0, kind: input, shape index: {}]
  %s1 = inlined_call_operand.vmem [shape: f32[1,256], index: 1, kind: input, shape index: {}]
  %s2 = inlined_call_operand.vmem [shape: f32[1,256], index: 2, kind: input, shape index: {}]
  %s3 = inlined_call_operand.vmem [shape: f32[2,1,1], index: 3, kind: output, shape index: {}]
  %s4 = sld [smem:[#allocation0]]
  $region65: #{tpu_custom_call.1} parent=0
    _
  %s6 = ssub.s32 1, %s4
  %s7 = scalar_select 0, %s6, %s4
  $region1: #{tpu_custom_call.1} parent=0
    #allocation4 [shape = 'u8[16384]{0}', space=vmem, size = 0x4000, scoped, tag = 'input window, operand 0']
    #allocation5 [shape = 's32[2]{0}', space=sflag, size = 0x8, scoped, tag = 'scoped memory for tpu_custom_call.1']
    %8 = vsyncpa [#allocation5], 0
    %s9 = scalar_lea.sflag [#allocation5], 1
    %10 = vsyncpa %s9, 0
    loop: start=0, step=1, limit=4
    $region2: #{tpu_custom_call.1} parent=1 // loop_pre_header
      _
    $region3: #{tpu_custom_call.1} parent=1 // loop_header
      %s12 = sphi 0, %s16
      %p13 = scmp.ge.s32.totalorder %s12, 4
      %s19 = sphi 0, %s31
      %s20 = sphi 0, %s27
      %s21 = sphi 0, %s19
      %s22 = sphi 0, %s20
      %s23 = sphi 0, %s21
      %s24 = sphi 0, %s22
      %s40 = sphi 0, %s42
      %s43 = sphi 0, %s40
      %s44 = sphi 0, %s43
      %s60 = sphi 0, %s44
      %s64 = sphi 0, %s64
      %s66 = sphi 0, %s64
      %s67 = sphi 0, %s66
      %s81 = sphi 0, %s67
      %s85 = sphi 0, %s85
      %s87 = sphi 0, %s85
      %s88 = sphi 0, %s87
      %s102 = sphi 0, %s88
      %s108 = sphi 0, %s110
      %s111 = sphi 0, %s108
      %s112 = sphi 0, %s111
      %s128 = sphi 0, %s112
    $region4: #{tpu_custom_call.1} parent=1 // loop_header_branch
      %15 = sbr.rel (%p13) target = $region8
    $region5: #{tpu_custom_call.1} parent=1 // loop_body
      %s17 = ssub.s32 %s12, 1
      %s18 = ssub.s32 %s12, 2
      %s25 = sadd.s32 1, %s20
      %p26 = scmp.ge.s32.totalorder %s25, 1
      %s27 = scalar_select %p26, 0, %s25
      %s28 = sadd.s32 1, %s19
      %s29 = scalar_select %p26, %s28, %s19
      %p30 = scmp.ge.s32.totalorder %s29, 2
      %s31 = scalar_select %p30, 0, %s29
      %s32 = sadd.s32 %s19, %s20
      %p33 = scmp.lt.s32.totalorder %s32, 0
      %s34 = scalar_select %p33, %s32, 0
      %s35 = sadd.s32 %s31, %s27
      %p36 = scmp.lt.s32.totalorder %s35, 0
      %s37 = scalar_select %p36, %s35, 0
      %s38 = ssub.s32 %s34, %s37
      %p39 = scmp.eq.s32.totalorder %s38, 0
      %s41 = sadd.s32 %s40, 1
      %s42 = scalar_select %p39, %s40, %s41
      %p45 = pneg %p39
      %p46 = scmp.eq.s32.totalorder %s12, 1
      %p47 = por %p45, %p46
      %p48 = scmp.ne.s32.totalorder %s40, %s43
      %p49 = scmp.eq.s32.totalorder %s12, 0
      %p50 = por %p48, %p49
      %p51 = scmp.ne.s32.totalorder %s40, %s43
      %p52 = scmp.eq.s32.totalorder %s17, 1
      %p53 = por %p51, %p52
      %p54 = scmp.ne.s32.totalorder %s43, %s44
      %p55 = scmp.eq.s32.totalorder %s17, 0
      %p56 = por %p54, %p55
      %p57 = scmp.ne.s32.totalorder %s43, %s44
      %p58 = scmp.eq.s32.totalorder %s18, 1
      %p59 = por %p57, %p58
      %p61 = scmp.ne.s32.totalorder %s44, %s60
      %p62 = scmp.eq.s32.totalorder %s18, 0
      %p63 = por %p61, %p62
      %s65 = sadd.s32 %s64, 1
      %p68 = scmp.eq.s32.totalorder %s12, 1
      %p69 = scmp.ne.s32.totalorder %s64, %s66
      %p70 = scmp.eq.s32.totalorder %s12, 0
      %p71 = por %p69, %p70
      %p72 = scmp.ne.s32.totalorder %s64, %s66
      %p73 = scmp.eq.s32.totalorder %s17, 1
      %p74 = por %p72, %p73
      %p75 = scmp.ne.s32.totalorder %s66, %s67
      %p76 = scmp.eq.s32.totalorder %s17, 0
      %p77 = por %p75, %p76
      %p78 = scmp.ne.s32.totalorder %s66, %s67
      %p79 = scmp.eq.s32.totalorder %s18, 1
      %p80 = por %p78, %p79
      %p82 = scmp.ne.s32.totalorder %s67, %s81
      %p83 = scmp.eq.s32.totalorder %s18, 0
      %p84 = por %p82, %p83
      %s86 = sadd.s32 %s85, 1
      %p89 = scmp.eq.s32.totalorder %s12, 1
      %p90 = scmp.ne.s32.totalorder %s85, %s87
      %p91 = scmp.eq.s32.totalorder %s12, 0
      %p92 = por %p90, %p91
      %p93 = scmp.ne.s32.totalorder %s85, %s87
      %p94 = scmp.eq.s32.totalorder %s17, 1
      %p95 = por %p93, %p94
      %p96 = scmp.ne.s32.totalorder %s87, %s88
      %p97 = scmp.eq.s32.totalorder %s17, 0
      %p98 = por %p96, %p97
      %p99 = scmp.ne.s32.totalorder %s87, %s88
      %p100 = scmp.eq.s32.totalorder %s18, 1
      %p101 = por %p99, %p100
      %p103 = scmp.ne.s32.totalorder %s88, %s102
      %p104 = scmp.eq.s32.totalorder %s18, 0
      %p105 = por %p103, %p104
      %s106 = ssub.s32 %s19, %s31
      %p107 = scmp.eq.s32.totalorder %s106, 0
      %s109 = sadd.s32 %s108, 1
      %s110 = scalar_select %p107, %s108, %s109
      %p113 = pneg %p107
      %p114 = scmp.eq.s32.totalorder %s12, 1
      %p115 = por %p113, %p114
      %p116 = scmp.ne.s32.totalorder %s108, %s111
      %p117 = scmp.eq.s32.totalorder %s12, 0
      %p118 = por %p116, %p117
      %p119 = scmp.ne.s32.totalorder %s108, %s111
      %p120 = scmp.eq.s32.totalorder %s17, 1
      %p121 = por %p119, %p120
      %p122 = scmp.ne.s32.totalorder %s111, %s112
      %p123 = scmp.eq.s32.totalorder %s17, 0
      %p124 = por %p122, %p123
      %p125 = scmp.ne.s32.totalorder %s111, %s112
      %p126 = scmp.eq.s32.totalorder %s18, 1
      %p127 = por %p125, %p126
      %p129 = scmp.ne.s32.totalorder %s112, %s128
      %p130 = scmp.eq.s32.totalorder %s18, 0
      %p131 = por %p129, %p130
      %p132 = scmp.le.s32.totalorder 1, %s12
      %p133 = scmp.lt.s32.totalorder %s12, 3
      %p134 = pnand %p132, %p133
      %p135 = pneg %p134
      // Predicated region
      $region9: #{tpu_custom_call.1} parent=5 // pred_check
        _
      $region10: #{tpu_custom_call.1} parent=5 // pred_check_branch
        %137 = sbr.rel (%p134) target = $region12
      $region11: #{tpu_custom_call.1} parent=5 // pred_region
        %s138 = ssub.s32 %s12, 1
        // Predicated region
        $region13: #{tpu_custom_call.1} parent=11 // pred_check
          %p139 = pneg %p77
        $region14: #{tpu_custom_call.1} parent=11 // pred_check_branch
          %141 = sbr.rel (%p139) target = $region16
        $region15: #{tpu_custom_call.1} parent=11 // pred_region
          _
        $region16: #{tpu_custom_call.1} parent=11 // pred_fallthru
          _
        // Predicated region
        $region17: #{tpu_custom_call.1} parent=11 // pred_check
          %p142 = pneg %p98
        $region18: #{tpu_custom_call.1} parent=11 // pred_check_branch
          %144 = sbr.rel (%p142) target = $region20
        $region19: #{tpu_custom_call.1} parent=11 // pred_region
          _
        $region20: #{tpu_custom_call.1} parent=11 // pred_fallthru
          _
      $region12: #{tpu_custom_call.1} parent=5 // pred_fallthru
        _
      %p145 = scmp.lt.s32.totalorder %s12, 2
      // Predicated region
      $region21: #{tpu_custom_call.1} parent=5 // pred_check
        %p146 = pneg %p145
      $region22: #{tpu_custom_call.1} parent=5 // pred_check_branch
        %148 = sbr.rel (%p146) target = $region24
      $region23: #{tpu_custom_call.1} parent=5 // pred_region
        // Predicated region
        $region25: #{tpu_custom_call.1} parent=23 // pred_check
          %p149 = pneg %p50
        $region26: #{tpu_custom_call.1} parent=23 // pred_check_branch
          %151 = sbr.rel (%p149) target = $region28
        $region27: #{tpu_custom_call.1} parent=23 // pred_region
          %s152 = sand.u32 %s40, 1
          %s153 = scalar_lea.sflag [#allocation5], %s152
          %s154 = sand.u32 %s40, 1
          %s155 = smul.addr %s154, 16
          %s156 = scalar_lea.vmem [#allocation4], %s155
          %s157 = sadd.s32 %s19, %s20
          %p158 = scmp.lt.s32.totalorder %s157, 0
          %s159 = scalar_select %p158, %s157, 0
          %s161 = ssub.s32 256, 256
          %162 = vsyncadd %s153, %s161
          %s163 = smul.addr %s159, 2
          %s164 = smul.addr %s163, 128
          %s165 = scalar_lea.hbm %s0, %s164
          %s167 = sshll.u32 %s156, 4
          %s168 = int_to_ptr.vmem [resolvable:$true] %s167
          %170 = dma.hbm_to_vmem [thread:$0]  %s165, 256, %s168, %s153
        $region28: #{tpu_custom_call.1} parent=23 // pred_fallthru
          _
      $region24: #{tpu_custom_call.1} parent=5 // pred_fallthru
        _
      %p171 = scmp.le.s32.totalorder 1, %s12
      %p172 = scmp.lt.s32.totalorder %s12, 3
      %p173 = pnand %p171, %p172
      %p174 = pneg %p173
      // Predicated region
      $region29: #{tpu_custom_call.1} parent=5 // pred_check
        _
      $region30: #{tpu_custom_call.1} parent=5 // pred_check_branch
        %176 = sbr.rel (%p173) target = $region32
      $region31: #{tpu_custom_call.1} parent=5 // pred_region
        %s177 = ssub.s32 %s12, 1
        %s178 = sand.u32 %s43, 1
        %s179 = scalar_lea.sflag [#allocation5], %s178
        %s180 = sand.u32 %s43, 1
        %s181 = smul.addr %s180, 16
        %s182 = scalar_lea.vmem [#allocation4], %s181
        // Predicated region
        $region33: #{tpu_custom_call.1} parent=31 // pred_check
          %p183 = pneg %p56
        $region34: #{tpu_custom_call.1} parent=31 // pred_check_branch
          %185 = sbr.rel (%p183) target = $region36
        $region35: #{tpu_custom_call.1} parent=31 // pred_region
          %186 = dma.done %s179, 256
        $region36: #{tpu_custom_call.1} parent=31 // pred_fallthru
          _
        %s187 = sand.u32 %s43, 1
        %s188 = scalar_lea.sflag [#allocation5], %s187
        %s189 = sand.u32 %s43, 1
        %s190 = smul.addr %s189, 16
        %s191 = scalar_lea.vmem [#allocation4], %s190
        %p192 = pneg %p56
        %p193 = pneg %p53
        %p194 = pneg %p77
        %p195 = pneg %p74
        %p196 = pneg %p98
        %p197 = pneg %p95
        %p198 = pneg %p124
        %p199 = pneg %p121
        %p200 = scmp.lt.s32.totalorder %s21, 1
        %s201 = scalar_select %p200, %s21, 1
        %s202 = scalar_lea.vmem %s3, %s201
        %s203 = sadd.s32 %s21, %s22
        %p204 = scmp.lt.s32.totalorder %s203, 0
        %s205 = scalar_select %p204, %s203, 0
        %p206 = scmp.lt.s32.totalorder %s21, 1
        %s207 = scalar_select %p206, %s21, 1
        %s208 = scalar_lea.vmem %s3, %s207
        %p209 = scmp.eq.s32.totalorder %s22, 0
        // Predicated region
        $region37: #{tpu_custom_call.1} parent=31 // pred_check
          %p210 = pneg %p209
        $region38: #{tpu_custom_call.1} parent=31 // pred_check_branch
          %212 = sbr.rel (%p210) target = $region40
        $region39: #{tpu_custom_call.1} parent=31 // pred_region
          %213 = vst [vmem:[#allocation2] sm:$0xff] 0.0
          %214 = vst [vmem:[#allocation2 + $0x8] sm:$0xff] 0.0
          %215 = vst [vmem:[#allocation3] sm:$0xff] 0.0
          %216 = vst [vmem:[#allocation3 + $0x8] sm:$0xff] 0.0
        $region40: #{tpu_custom_call.1} parent=31 // pred_fallthru
          _
        %s217 = sadd.s32 %s21, %s22
        %s218 = smul.u32 %s217, 8
        %s219 = sadd.s32 %s218, 8
        %p220 = scmp.le.s32.totalorder %s219, 8
        // Predicated region
        $region41: #{tpu_custom_call.1} parent=31 // pred_check
          %p221 = pneg %p220
        $region42: #{tpu_custom_call.1} parent=31 // pred_check_branch
          %223 = sbr.rel (%p221) target = $region44
        $region43: #{tpu_custom_call.1} parent=31 // pred_region
          %s224 = smul.u32 0, 2
          %s225 = smul.addr %s224, 8
          %s226 = scalar_lea.vmem %s182, %s225 [#allocation4]
          %v227 = vld [vmem:[%s226] sm:$0xff]
          %v228 = vld [vmem:[%s226 + $0x8] sm:$0xff]
          %229 = vrot.lane.b32.xlu0 %v227, 127
          %v230 = vpop.permute.xlu0 %229
          %231 = vrot.lane.b32.xlu0 %v228, 127
          %v232 = vpop.permute.xlu0 %231
          %v233 = vlaneseq
          %v234 = vand.u32 %v233, 127
          %vm235 = vcmp.lt.s32.totalorder %v234, 127
          %v236 = vsel %vm235, %v230, %v232
          %v237 = vsel %vm235, %v232, %v230
          %238 = vrot.lane.b32.xlu0 %v227, 112
          %v239 = vpop.permute.xlu0 %238
          %240 = vrot.lane.b32.xlu0 %v228, 112
          %v241 = vpop.permute.xlu0 %240
          %vm242 = vcmp.lt.s32.totalorder %v234, 112
          %v243 = vsel %vm242, %v239, %v241
          %v244 = vsel %vm242, %v241, %v239
          %v245 = vsub.f32 %v227, %v236
          %v246 = vsub.f32 %v228, %v237
          %v247 = vand.u32 2147483647, %v245
          %v248 = vand.u32 2147483647, %v246
          %v249 = vsub.f32 %v227, %v243
          %v250 = vsub.f32 %v228, %v244
          %v251 = vand.u32 2147483647, %v249
          %v252 = vand.u32 2147483647, %v250
          %v253 = vadd.f32 %v247, 0.0
          %v254 = vadd.f32 %v248, 0.0
          %v255 = vadd.f32 %v251, 0.0
          %v256 = vadd.f32 %v252, 0.0
          %v257 = vld [vmem:[#allocation2] sm:$0xff]
          %v258 = vld [vmem:[#allocation2 + $0x8] sm:$0xff]
          %v259 = vadd.f32 %v257, %v253
          %v260 = vadd.f32 %v258, %v254
          %261 = vst [vmem:[#allocation2] sm:$0xff] %v259
          %262 = vst [vmem:[#allocation2 + $0x8] sm:$0xff] %v260
          %v263 = vld [vmem:[#allocation3] sm:$0xff]
          %v264 = vld [vmem:[#allocation3 + $0x8] sm:$0xff]
          %v265 = vadd.f32 %v263, %v255
          %v266 = vadd.f32 %v264, %v256
          %267 = vst [vmem:[#allocation3] sm:$0xff] %v265
          %268 = vst [vmem:[#allocation3 + $0x8] sm:$0xff] %v266
        $region44: #{tpu_custom_call.1} parent=31 // pred_fallthru
          _
        %p269 = scmp.gt.s32.totalorder %s219, 8
        // Predicated region
        $region45: #{tpu_custom_call.1} parent=31 // pred_check
          %p270 = pneg %p269
        $region46: #{tpu_custom_call.1} parent=31 // pred_check_branch
          %272 = sbr.rel (%p270) target = $region48
        $region47: #{tpu_custom_call.1} parent=31 // pred_region
          %v273 = vlaneseq
          %v274 = vshrl.u32 %v273, 7
          %s275 = smul.u32 0, 2
          %s276 = smul.addr %s275, 8
          %s277 = scalar_lea.vmem %s182, %s276 [#allocation4]
          %v278 = vld [vmem:[%s277] sm:$0xff]
          %v279 = vld [vmem:[%s277 + $0x8] sm:$0xff]
          %280 = vrot.lane.b32.xlu0 %v278, 127
          %v281 = vpop.permute.xlu0 %280
          %282 = vrot.lane.b32.xlu0 %v279, 127
          %v283 = vpop.permute.xlu0 %282
          %v284 = vlaneseq
          %v285 = vand.u32 %v284, 127
          %vm286 = vcmp.lt.s32.totalorder %v285, 127
          %v287 = vsel %vm286, %v281, %v283
          %v288 = vsel %vm286, %v283, %v281
          %289 = vrot.lane.b32.xlu0 %v278, 112
          %v290 = vpop.permute.xlu0 %289
          %291 = vrot.lane.b32.xlu0 %v279, 112
          %v292 = vpop.permute.xlu0 %291
          %vm293 = vcmp.lt.s32.totalorder %v285, 112
          %v294 = vsel %vm293, %v290, %v292
          %v295 = vsel %vm293, %v292, %v290
          %v296 = vsub.f32 %v278, %v287
          %v297 = vsub.f32 %v279, %v288
          %v298 = vand.u32 2147483647, %v296
          %v299 = vand.u32 2147483647, %v297
          %v300 = vsub.f32 %v278, %v294
          %v301 = vsub.f32 %v279, %v295
          %v302 = vand.u32 2147483647, %v300
          %v303 = vand.u32 2147483647, %v301
          %v304 = vstv %s218
          %v305 = vadd.s32 %v304, %v274
          %vm306 = vcmp.lt.s32.totalorder %v305, 8
          %v307 = vsel %vm306, %v298, 0.0
          %v308 = vsel %vm306, %v299, 0.0
          %v309 = vadd.f32 %v307, 0.0
          %v310 = vadd.f32 %v308, 0.0
          %v311 = vsel %vm306, %v302, 0.0
          %v312 = vsel %vm306, %v303, 0.0
          %v313 = vadd.f32 %v311, 0.0
          %v314 = vadd.f32 %v312, 0.0
          %v315 = vld [vmem:[#allocation2] sm:$0xff]
          %v316 = vld [vmem:[#allocation2 + $0x8] sm:$0xff]
          %v317 = vadd.f32 %v315, %v309
          %v318 = vadd.f32 %v316, %v310
          %319 = vst [vmem:[#allocation2] sm:$0xff] %v317
          %320 = vst [vmem:[#allocation2 + $0x8] sm:$0xff] %v318
          %v321 = vld [vmem:[#allocation3] sm:$0xff]
          %v322 = vld [vmem:[#allocation3 + $0x8] sm:$0xff]
          %v323 = vadd.f32 %v321, %v313
          %v324 = vadd.f32 %v322, %v314
          %325 = vst [vmem:[#allocation3] sm:$0xff] %v323
          %326 = vst [vmem:[#allocation3 + $0x8] sm:$0xff] %v324
        $region48: #{tpu_custom_call.1} parent=31 // pred_fallthru
          _
        // Predicated region
        $region49: #{tpu_custom_call.1} parent=31 // pred_check
          %p327 = pneg %p209
        $region50: #{tpu_custom_call.1} parent=31 // pred_check_branch
          %329 = sbr.rel (%p327) target = $region52
        $region51: #{tpu_custom_call.1} parent=31 // pred_region
          %v330 = vld [vmem:[#allocation2] sm:$0xff]
          %v331 = vld [vmem:[#allocation2 + $0x8] sm:$0xff]
          %v332 = vld [vmem:[%s1] sm:$0x3]
          %v334 = vlaneseq
          %v335 = vshrl.u32 %v334, 7
          %v336 = vsub.s32 0, %v335
          %v337 = vrot.slane %v332, %v336
          %v338 = vlaneseq
          %v339 = vshrl.u32 %v338, 7
          %v340 = vsub.s32 1, %v339
          %v341 = vrot.slane %v332, %v340
          %v344 = vmul.f32 %v330, %v337
          %v345 = vmul.f32 %v331, %v341
          %v346 = vld [vmem:[#allocation3] sm:$0xff]
          %v347 = vld [vmem:[#allocation3 + $0x8] sm:$0xff]
          %v348 = vld [vmem:[%s2] sm:$0x3]
          %v350 = vlaneseq
          %v351 = vshrl.u32 %v350, 7
          %v352 = vsub.s32 0, %v351
          %v353 = vrot.slane %v348, %v352
          %v354 = vlaneseq
          %v355 = vshrl.u32 %v354, 7
          %v356 = vsub.s32 1, %v355
          %v357 = vrot.slane %v348, %v356
          %v360 = vmul.f32 %v346, %v353
          %v361 = vmul.f32 %v347, %v357
          %v362 = vadd.f32 %v344, %v360
          %v363 = vadd.f32 %v345, %v361
          %v364 = vrot.slane %v362, 4
          %v365 = vadd.f32 %v362, %v364
          %v366 = vrot.slane %v365, 2
          %v367 = vadd.f32 %v365, %v366
          %v368 = vrot.slane %v367, 1
          %v369 = vadd.f32 %v367, %v368
          %v370 = vrot.slane %v363, 4
          %v371 = vadd.f32 %v363, %v370
          %v372 = vrot.slane %v371, 2
          %v373 = vadd.f32 %v371, %v372
          %v374 = vrot.slane %v373, 1
          %v375 = vadd.f32 %v373, %v374
          %v376 = vadd.f32 %v369, %v375
          %377 = vadd.xlane.f32.xlu0 %v376
          %v378 = vpop.xlane.xlu0 %377
          %vm379 = vcmask 0
          %380 = vst.msk [vmem:[%s208] sm:$0x1] %vm379, %v378
        $region52: #{tpu_custom_call.1} parent=31 // pred_fallthru
          _
        %p381 = scmp.lt.s32.totalorder %s21, 1
        %s382 = scalar_select %p381, %s21, 1
        %s383 = scalar_lea.vmem %s3, %s382
        // Predicated region
        $region53: #{tpu_custom_call.1} parent=31 // pred_check
          %p384 = pneg %p121
        $region54: #{tpu_custom_call.1} parent=31 // pred_check_branch
          %386 = sbr.rel (%p384) target = $region56
        $region55: #{tpu_custom_call.1} parent=31 // pred_region
          _
        $region56: #{tpu_custom_call.1} parent=31 // pred_fallthru
          _
      $region32: #{tpu_custom_call.1} parent=5 // pred_fallthru
        _
      %p387 = scmp.le.s32.totalorder 2, %s12
      // Predicated region
      $region57: #{tpu_custom_call.1} parent=5 // pred_check
        %p388 = pneg %p387
      $region58: #{tpu_custom_call.1} parent=5 // pred_check_branch
        %390 = sbr.rel (%p388) target = $region60
      $region59: #{tpu_custom_call.1} parent=5 // pred_region
        %s391 = ssub.s32 %s12, 2
        // Predicated region
        $region61: #{tpu_custom_call.1} parent=59 // pred_check
          %p392 = pneg %p127
        $region62: #{tpu_custom_call.1} parent=59 // pred_check_branch
          %394 = sbr.rel (%p392) target = $region64
        $region63: #{tpu_custom_call.1} parent=59 // pred_region
          %p395 = scmp.lt.s32.totalorder %s23, 1
          %s396 = scalar_select %p395, %s23, 1
          %s397 = scalar_lea.vmem %s3, %s396
        $region64: #{tpu_custom_call.1} parent=59 // pred_fallthru
          _
      $region60: #{tpu_custom_call.1} parent=5 // pred_fallthru
        _
    $region6: #{tpu_custom_call.1} parent=1 // loop_footer
      %s16 = sadd.s32 1, %s12
    $region7: #{tpu_custom_call.1} parent=1 // loop_footer_branch
      %11 = sbr.rel target = $region3
    $region8: #{tpu_custom_call.1} parent=1 // loop_exit
      _
    %398 = vsyncpa [#allocation5], 1
    %s399 = scalar_lea.sflag [#allocation5], 1
    %400 = vsyncpa %s399, 1

</llo_original>
